<compile_context>
chip_gen: v6e
topology: v6e:2x2x1
jax: 0.10.0
libtpu: 0.0.40
codegen_flags: <defaults>
</compile_context>

<pallas_src>
import functools

import jax
import jax.numpy as jnp
from jax.experimental import pallas as pl
from jax.experimental.pallas import tpu as pltpu


def _rmsnorm_kernel(x_ref, w_ref, o_ref, *, eps, input_dtype):
    # x_ref: (tm, H) tile of hidden_states; w_ref: (1, H) weight (resident).
    x = x_ref[...].astype(jnp.float32)
    var = jnp.mean(x * x, axis=-1, keepdims=True)
    inv = jax.lax.rsqrt(var + eps)                  # EUP slot, effectively free
    normed = (x * inv).astype(input_dtype)          # cast back to input dtype
    # If w_ref is already input_dtype (fast path) this multiply stays in the
    # narrow dtype (bf16 VALU on v6e/v7x, half the vreg footprint); with an
    # f32 weight (strict path) it promotes to f32 exactly like PyTorch.
    out = w_ref[...] * normed
    o_ref[...] = out.astype(o_ref.dtype)


def _round_up(x, m):
    return ((x + m - 1) // m) * m


def _chip_profile():
    """(num_tensorcores, vmem_limit_bytes, scratch_budget_bytes, target_block_bytes)."""
    kind = ""
    try:
        kind = jax.devices()[0].device_kind.lower()
    except Exception:
        pass
    is_v7 = ("v7" in kind) or ("tpu7" in kind)
    if not is_v7:
        # Fallback heuristic: v7x has 64 MiB VMEM per TensorCore.
        try:
            info = pltpu.get_tpu_info()
            if getattr(info, "vmem_capacity_bytes", 128 << 20) <= (64 << 20):
                is_v7 = True
        except Exception:
            pass
    if is_v7:
        # 2 TCs, 64 MiB physical VMEM: stay conservative on scratch.
        return 2, 32 << 20, 24 << 20, 4 << 20
    # v5e / v6e: 1 TC, 128 MiB physical VMEM.
    return 1, 64 << 20, 48 << 20, 2 << 20


def _choose_block_rows(R, H, in_dtype, out_dtype, *, target_block_bytes,
                       vmem_budget_bytes, num_tensorcores, max_rows=4096):
    """Pick a row-tile size for a purely HBM-bandwidth-bound row-wise op."""
    in_b = jnp.dtype(in_dtype).itemsize
    out_b = jnp.dtype(out_dtype).itemsize
    pack = max(8, 32 // in_b)           # sublane pack: 8 f32, 16 bf16, 32 int8
    if R <= pack:
        # Single block whose leading dim equals the full array dim.
        return R
    # Rows such that one input block is ~target_block_bytes (amortizes the
    # ~0.35 us per-grid-step overhead).
    tm = target_block_bytes // (H * in_b)
    tm = max(pack, min(max_rows, tm))
    tm = _round_up(tm, pack)
    # Never exceed the (padded) row count.
    tm = min(tm, _round_up(R, pack))
    # On 2-TC chips (v7x) keep >= ~8 grid steps so each TensorCore gets >=3-4
    # pipelined iterations after megacore sharding (grid=2 leaves each core a
    # single, unpipelined step).  Single-TC chips skip this cap entirely.
    if num_tensorcores >= 2:
        tm = min(tm, max(pack, _round_up(pl.cdiv(R, 8), pack)))
    # VMEM: up to 3 buffers for the streaming input (Buffered(3)) plus a
    # double-buffered output block must fit the scratch budget.
    per_row = H * (3 * in_b + 2 * out_b)
    max_fit = max(pack, (vmem_budget_bytes // per_row) // pack * pack)
    tm = min(tm, max_fit)
    return tm


def intern_rms_norm(hidden_states, weight, eps=1e-6, *, block_rows=None,
                    strict_dtype_promotion=False):
    """RMSNorm over the last axis of `hidden_states` (InternRMSNorm.forward).

    strict_dtype_promotion=False (default): the weight is cast to the
      activation dtype, so the output dtype matches the activations (bf16 in
      bf16 -> bf16 out).  This is what real InternVL checkpoints do and cuts
      HBM store traffic by ~2x for bf16 activations.
    strict_dtype_promotion=True: exact PyTorch promotion
      (f32 weight * bf16 normed -> f32 output).
    """
    orig_shape = hidden_states.shape
    H = orig_shape[-1]
    x2d = hidden_states.reshape(-1, H)
    R = x2d.shape[0]

    input_dtype = hidden_states.dtype
    w = weight if strict_dtype_promotion else weight.astype(input_dtype)
    out_dtype = jnp.promote_types(w.dtype, input_dtype)

    num_tc, vmem_limit, scratch_budget, target_block = _chip_profile()

    tm = block_rows if block_rows is not None else _choose_block_rows(
        R, H, input_dtype, out_dtype,
        target_block_bytes=target_block,
        vmem_budget_bytes=scratch_budget,
        num_tensorcores=num_tc)
    grid_rows = pl.cdiv(R, tm)

    w2d = w.reshape(1, H)
    kernel = functools.partial(_rmsnorm_kernel, eps=eps, input_dtype=input_dtype)

    # Streaming-input spec; request a 3rd pipeline buffer when there are
    # enough grid steps for it to matter (pure streaming kernel -> nothing to
    # hide DMA jitter behind).
    def _x_spec():
        if grid_rows >= 4:
            try:
                return pl.BlockSpec((tm, H), lambda i: (i, 0),
                                    pipeline_mode=pl.Buffered(3))
            except TypeError:
                pass  # older jax without pipeline_mode kwarg
        return pl.BlockSpec((tm, H), lambda i: (i, 0))

    in_b = jnp.dtype(input_dtype).itemsize
    out_b = jnp.dtype(out_dtype).itemsize
    cost = pl.CostEstimate(
        flops=4 * R * H,
        transcendentals=R,
        bytes_accessed=R * H * (in_b + out_b) + H * jnp.dtype(w.dtype).itemsize,
    )

    out = pl.pallas_call(
        kernel,
        out_shape=jax.ShapeDtypeStruct((R, H), out_dtype),
        grid_spec=pltpu.PrefetchScalarGridSpec(
            num_scalar_prefetch=0,
            grid=(grid_rows,),
            in_specs=[
                _x_spec(),
                pl.BlockSpec((1, H), lambda i: (0, 0)),   # resident weight
            ],
            out_specs=pl.BlockSpec((tm, H), lambda i: (i, 0)),
        ),
        compiler_params=pltpu.CompilerParams(
            dimension_semantics=("parallel",),
            vmem_limit_bytes=vmem_limit,
        ),
        cost_estimate=cost,
    )(x2d, w2d)

    return out.reshape(orig_shape[:-1] + (H,))


def intern_rms_norm_ref(hidden_states, weight, eps=1e-6):
    x = hidden_states.astype(jnp.float32)
    var = jnp.mean(x * x, axis=-1, keepdims=True)
    y = (x * jax.lax.rsqrt(var + eps)).astype(hidden_states.dtype)
    return weight * y


if __name__ == "__main__":
    key = jax.random.PRNGKey(0)
    kx, kw, kx2 = jax.random.split(key, 3)
    batch, seq, hidden = 2, 8, 128

    x = jax.random.normal(kx, (batch, seq, hidden), dtype=jnp.float32)
    # InternRMSNorm initializes weight to ones; perturb so the test is not
    # weight-blind.
    weight = (1.0 + 0.1 * jax.random.normal(kw, (hidden,))).astype(jnp.float32)

    # f32 activations: fast path and strict path are identical to PyTorch.
    out = jax.block_until_ready(intern_rms_norm(x, weight, eps=1e-6))
    ref = intern_rms_norm_ref(x, weight, eps=1e-6)
    assert out.shape == ref.shape, (out.shape, ref.shape)
    assert out.dtype == ref.dtype, (out.dtype, ref.dtype)
    assert jnp.allclose(out, ref, atol=1e-5, rtol=1e-5), "mismatch vs reference"

    # bf16 activations, ragged row count.
    xb = jax.random.normal(kx2, (3, 7, hidden), dtype=jnp.bfloat16)

    # Default fast path: weight cast to bf16 -> bf16 output (fewer HBM bytes).
    out_fast = jax.block_until_ready(intern_rms_norm(xb, weight, eps=1e-6))
    ref_fast = intern_rms_norm_ref(xb, weight.astype(jnp.bfloat16), eps=1e-6)
    assert out_fast.shape == ref_fast.shape
    assert out_fast.dtype == jnp.bfloat16, out_fast.dtype
    assert jnp.allclose(out_fast.astype(jnp.float32),
                        ref_fast.astype(jnp.float32),
                        atol=2e-2, rtol=2e-2), "mismatch (bf16 fast path)"

    # Strict PyTorch promotion: f32 weight * bf16 normed -> f32 output.
    out_strict = jax.block_until_ready(
        intern_rms_norm(xb, weight, eps=1e-6, strict_dtype_promotion=True))
    ref_strict = intern_rms_norm_ref(xb, weight, eps=1e-6)
    assert out_strict.shape == ref_strict.shape
    assert out_strict.dtype == ref_strict.dtype == jnp.float32
    assert jnp.allclose(out_strict, ref_strict,
                        atol=2e-2, rtol=2e-2), "mismatch (strict promotion)"

    print("KERNEL_OK")
</pallas_src>

<mosaic_0001>
module attributes {stable_mosaic.version = 11 : i64} {
  func.func @_rmsnorm_kernel(%arg0: i32, %arg1: memref<16x128xf32, #tpu.memory_space<vmem>>, %arg2: memref<1x128xf32, #tpu.memory_space<vmem>>, %arg3: memref<16x128xf32, #tpu.memory_space<vmem>>) attributes {dimension_semantics = [#tpu.dimension_semantics<parallel>], iteration_bounds = array<i64: 1>, scalar_prefetch = 0 : i64, scratch_operands = 0 : i64, tpu.core_type = #tpu.core_type<tc>, window_params = [{transform_indices = @transform_0, window_bounds = array<i64: 16, 128>}, {pipeline_mode = #tpu.pipeline_mode<synchronous>, transform_indices = @transform_1, window_bounds = array<i64: 1, 128>}, {transform_indices = @transform_2, window_bounds = array<i64: 16, 128>}]} {
    %c0 = arith.constant 0 : index
    %c0_0 = arith.constant 0 : index
    %0 = vector.load %arg1[%c0, %c0_0] : memref<16x128xf32, #tpu.memory_space<vmem>>, vector<16x128xf32>
    %1 = arith.mulf %0, %0 : vector<16x128xf32>
    %cst = arith.constant dense<0.000000e+00> : vector<16xf32>
    %2 = vector.multi_reduction <add>, %1, %cst [1] : vector<16x128xf32> to vector<16xf32>
    %3 = vector.shape_cast %2 : vector<16xf32> to vector<16x1xf32>
    %cst_1 = arith.constant 1.280000e+02 : f32
    %4 = vector.broadcast %cst_1 : f32 to vector<16x1xf32>
    %5 = arith.divf %3, %4 : vector<16x1xf32>
    %cst_2 = arith.constant 9.99999997E-7 : f32
    %6 = vector.broadcast %cst_2 : f32 to vector<16x1xf32>
    %7 = arith.addf %5, %6 : vector<16x1xf32>
    %8 = math.rsqrt %7 : vector<16x1xf32>
    %9 = vector.broadcast %8 : vector<16x1xf32> to vector<16x128xf32>
    %10 = arith.mulf %0, %9 : vector<16x128xf32>
    %c0_3 = arith.constant 0 : index
    %c0_4 = arith.constant 0 : index
    %11 = vector.load %arg2[%c0_3, %c0_4] : memref<1x128xf32, #tpu.memory_space<vmem>>, vector<1x128xf32>
    %12 = vector.broadcast %11 : vector<1x128xf32> to vector<16x128xf32>
    %13 = arith.mulf %12, %10 : vector<16x128xf32>
    %c0_5 = arith.constant 0 : index
    %c0_6 = arith.constant 0 : index
    %14 = vector.load %arg3[%c0_5, %c0_6] : memref<16x128xf32, #tpu.memory_space<vmem>>, vector<16x128xf32>
    tpu.vector_store %arg3[%c0_5, %c0_6], %13 {strides = array<i32>} : memref<16x128xf32, #tpu.memory_space<vmem>>, vector<16x128xf32>,
    return
  }
  func.func @transform_0(%arg0: i32) -> (i32, i32) {
    %c0_i32 = arith.constant 0 : i32
    %c0_i32_0 = arith.constant 0 : i32
    return %arg0, %c0_i32 : i32, i32
  }
  func.func @transform_1(%arg0: i32) -> (i32, i32) {
    %c0_i32 = arith.constant 0 : i32
    %c0_i32_0 = arith.constant 0 : i32
    %c0_i32_1 = arith.constant 0 : i32
    return %c0_i32, %c0_i32_0 : i32, i32
  }
  func.func @transform_2(%arg0: i32) -> (i32, i32) {
    %c0_i32 = arith.constant 0 : i32
    %c0_i32_0 = arith.constant 0 : i32
    return %arg0, %c0_i32 : i32, i32
  }
}

</mosaic_0001>

<llo_original>
// kernel: tpu_custom_call.1
$region0: #{tpu_custom_call.1}
  #allocation0 [shape = 'u32[]', space=smem, size = 0x4, offset = 0x4, fixed_abs, tag = 'smem constant byte address 0x4 - core index']
  #allocation1 [shape = 'u32[144,128]{1,0:T(1,128)}', space=vmem, size = 0x12000, scoped, tag = 'internal scratch']
  %s0 = inlined_call_operand.hbm [shape: f32[16,128], index: 0, kind: input, shape index: {}]
  %s1 = inlined_call_operand.vmem [shape: f32[1,128], index: 1, kind: input, shape index: {}]
  %s2 = inlined_call_operand.hbm [shape: f32[16,128], index: 2, kind: output, shape index: {}]
  %s3 = sld [smem:[#allocation0]]
  $region22: #{tpu_custom_call.1} parent=0
    _
  %s5 = ssub.s32 1, %s3
  %s6 = scalar_select 0, %s5, %s3
  $region1: #{tpu_custom_call.1} parent=0
    #allocation2 [shape = 'u8[8192]{0}', space=vmem, size = 0x2000, scoped, tag = 'input window, operand 0, single buffered']
    #allocation3 [shape = 's32[1]{0}', space=sflag, size = 0x4, scoped, tag = 'scoped memory for tpu_custom_call.1']
    #allocation4 [shape = 's32[1]{0}', space=sflag, size = 0x4, scoped, tag = 'scoped memory for tpu_custom_call.1']
    #allocation5 [shape = 'u8[8192]{0}', space=vmem, size = 0x2000, scoped, tag = 'output window, operand 0, single buffered']
    %7 = vsyncpa [#allocation3], 0
    %8 = vsyncpa [#allocation4], 0
    // Predicated region
    $region2: #{tpu_custom_call.1} parent=1 // pred_check
      _
    $region3: #{tpu_custom_call.1} parent=1 // pred_check_branch
      %10 = sbr.rel (0) target = $region5
    $region4: #{tpu_custom_call.1} parent=1 // pred_region
      %s12 = ssub.s32 256, 256
      %13 = vsyncadd [#allocation3], %s12
      %s14 = sshll.u32 [#allocation2], 4
      %s15 = int_to_ptr.vmem [resolvable:$true] %s14
      %20 = dma.hbm_to_vmem [thread:$0]  %s0, 256, %s15, [#allocation3], 128, 128, 8
    $region5: #{tpu_custom_call.1} parent=1 // pred_fallthru
      _
    // Predicated region
    $region6: #{tpu_custom_call.1} parent=1 // pred_check
      _
    $region7: #{tpu_custom_call.1} parent=1 // pred_check_branch
      %22 = sbr.rel (0) target = $region9
    $region8: #{tpu_custom_call.1} parent=1 // pred_region
      _
    $region9: #{tpu_custom_call.1} parent=1 // pred_fallthru
      _
    // Predicated region
    $region10: #{tpu_custom_call.1} parent=1 // pred_check
      _
    $region11: #{tpu_custom_call.1} parent=1 // pred_check_branch
      %24 = sbr.rel (0) target = $region13
    $region12: #{tpu_custom_call.1} parent=1 // pred_region
      %25 = dma.done [#allocation3], 256
    $region13: #{tpu_custom_call.1} parent=1 // pred_fallthru
      _
    %v26 = vld [vmem:[#allocation2] sm:$0xff]
    %v27 = vld [vmem:[#allocation2 + $0x8] sm:$0xff]
    %v28 = vmul.f32 %v26, %v26
    %v29 = vmul.f32 %v27, %v27
    %30 = vadd.xlane.f32.xlu0 %v28
    %v31 = vpop.xlane.xlu0 %30
    %32 = vadd.xlane.f32.xlu0 %v29
    %v33 = vpop.xlane.xlu0 %32
    %v34 = vrcp.pop 128.0
    %v35 = vmul.f32 %v31, %v34
    %v36 = vmul.f32 %v33, %v34
    %v37 = vadd.f32 %v35, 1e-06
    %v38 = vadd.f32 %v36, 1e-06
    %v39 = vrsqrt.pop %v37
    %v40 = vrsqrt.pop %v38
    %v41 = vmul.f32 %v26, %v39
    %v42 = vmul.f32 %v27, %v40
    %v43 = vld [vmem:[%s1] sm:$0x1]
    %v45 = vlaneseq
    %v46 = vshrl.u32 %v45, 7
    %v47 = vsub.s32 0, %v46
    %v48 = vrot.slane %v43, %v47
    %v50 = vmul.f32 %v48, %v41
    %v51 = vmul.f32 %v48, %v42
    %52 = vst [vmem:[#allocation5] sm:$0xff] %v50
    %53 = vst [vmem:[#allocation5 + $0x8] sm:$0xff] %v51
    // Predicated region
    $region14: #{tpu_custom_call.1} parent=1 // pred_check
      _
    $region15: #{tpu_custom_call.1} parent=1 // pred_check_branch
      %55 = sbr.rel (0) target = $region17
    $region16: #{tpu_custom_call.1} parent=1 // pred_region
      %s57 = ssub.s32 256, 256
      %58 = vsyncadd [#allocation4], %s57
      %s59 = sshll.u32 [#allocation5], 4
      %s60 = int_to_ptr.vmem [resolvable:$true] %s59
      %65 = dma.vmem_to_hbm [thread:$0]  %s60, 256, %s2, [#allocation4], 128, 128, 8
    $region17: #{tpu_custom_call.1} parent=1 // pred_fallthru
      _
    // Predicated region
    $region18: #{tpu_custom_call.1} parent=1 // pred_check
      _
    $region19: #{tpu_custom_call.1} parent=1 // pred_check_branch
      %67 = sbr.rel (0) target = $region21
    $region20: #{tpu_custom_call.1} parent=1 // pred_region
      %68 = dma.done [#allocation4], 256
    $region21: #{tpu_custom_call.1} parent=1 // pred_fallthru
      _
    %69 = vsyncpa [#allocation3], 1
    %70 = vsyncpa [#allocation4], 1

</llo_original>
